<compile_context>
chip_gen: v5e
topology: v5e:2x2
jax: 0.10.0
libtpu: 0.0.40
codegen_flags: <defaults>
</compile_context>

<pallas_src>
import functools

import jax
import jax.numpy as jnp
from jax.experimental import pallas as pl
from jax.experimental.pallas import tpu as pltpu


def _tversky_partials_kernel(pred_ref, tgt_ref, out_ref, tp_ref, sp_ref, st_ref,
                             *, C: int):
    k = pl.program_id(1)

    @pl.when(k == 0)
    def _init():
        tp_ref[...] = jnp.zeros_like(tp_ref)
        sp_ref[...] = jnp.zeros_like(sp_ref)
        st_ref[...] = jnp.zeros_like(st_ref)

    p = pred_ref[...].astype(jnp.float32)   # (B, C, TS)
    t = tgt_ref[...].astype(jnp.float32)    # (B, Ct, TS), Ct in {1, C}

    # Hot path: one elementwise multiply + three lane reductions per block.
    tp_ref[...] += jnp.sum(p * t, axis=-1)   # (B, C)   sum(p * t)
    sp_ref[...] += jnp.sum(p, axis=-1)       # (B, C)   sum(p)
    st_ref[...] += jnp.sum(t, axis=-1)       # (B, Ct)  sum(t)

    @pl.when(k == pl.num_programs(1) - 1)
    def _finalize():
        B = tp_ref.shape[0]
        out_ref[0, 0, :, :] = tp_ref[...]
        out_ref[0, 1, :, :] = sp_ref[...]
        out_ref[0, 2, :, :] = jnp.broadcast_to(st_ref[...], (B, C))


def _round_up(x: int, m: int) -> int:
    return ((x + m - 1) // m) * m


def tversky_loss(prediction: jax.Array,
                 target: jax.Array,
                 reduction: str = "mean",
                 alpha: float = 0.5,
                 epsilon: float = 1e-6) -> jax.Array:
    assert 0.0 < alpha < 1.0, "Error. Alpha should be between 0 and 1"

    # Match PyTorch's unsqueeze semantics; keep target un-broadcast over channels.
    if target.ndim == 3:
        target = target[:, None, :, :]
    if not jnp.issubdtype(target.dtype, jnp.floating):
        target = target.astype(jnp.float32)

    B, C, H, W = prediction.shape
    Ct = target.shape[1]          # 1 (broadcast over channels) or C
    HW = H * W

    pred2 = prediction.reshape(B, C, HW)
    tgt2 = target.reshape(B, Ct, HW)

    # --- spatial tile selection (kernel is HBM-bandwidth bound) ------------------
    # Biggest multiple of 128 such that the double-buffered input blocks fit well
    # inside the scoped VMEM budget on every generation (v5e 16 MiB / v6e 32 MiB /
    # v7x 32 MiB defaults); capped at 8192 lanes.
    pred_bytes = pred2.dtype.itemsize
    tgt_bytes = tgt2.dtype.itemsize
    vmem_input_budget = 16 * 1024 * 1024
    per_lane = 2 * (B * C * pred_bytes + B * Ct * tgt_bytes)   # x2 double-buffering
    ts_cap = max(128, min(8192, (vmem_input_budget // per_lane) // 128 * 128))

    hw128 = _round_up(HW, 128)
    if hw128 <= ts_cap:
        TS, P, spp = hw128, 1, 1
    else:
        TS = ts_cap
        n_steps = -(-hw128 // TS)
        P = 2 if n_steps >= 2 else 1          # leading parallel axis (both TCs on v7x)
        spp = -(-n_steps // P)                # steps per parallel slice
    hw_pad = P * spp * TS

    if hw_pad != HW:                          # zero-pad: zeros add 0 to every sum
        pad = hw_pad - HW
        pred2 = jnp.pad(pred2, ((0, 0), (0, 0), (0, pad)))
        tgt2 = jnp.pad(tgt2, ((0, 0), (0, 0), (0, pad)))

    kernel = functools.partial(_tversky_partials_kernel, C=C)

    partials = pl.pallas_call(
        kernel,
        out_shape=jax.ShapeDtypeStruct((P, 3, B, C), jnp.float32),
        grid_spec=pltpu.PrefetchScalarGridSpec(
            num_scalar_prefetch=0,
            grid=(P, spp),
            in_specs=[
                pl.BlockSpec((B, C, TS), lambda p, k: (0, 0, p * spp + k)),
                pl.BlockSpec((B, Ct, TS), lambda p, k: (0, 0, p * spp + k)),
            ],
            out_specs=pl.BlockSpec((1, 3, B, C), lambda p, k: (p, 0, 0, 0)),
            scratch_shapes=[
                pltpu.VMEM((B, C), jnp.float32),    # sum(p * t)
                pltpu.VMEM((B, C), jnp.float32),    # sum(p)
                pltpu.VMEM((B, Ct), jnp.float32),   # sum(t)
            ],
        ),
        compiler_params=pltpu.CompilerParams(
            dimension_semantics=("parallel", "arbitrary"),
            vmem_limit_bytes=32 * 1024 * 1024),
    )(pred2, tgt2)

    # Tiny finalize in plain JAX (combines the per-core / per-parallel-slice partials).
    totals = jnp.sum(partials, axis=0)               # (3, B, C)
    tp, sp, st = totals[0], totals[1], totals[2]
    fn = st - tp                                     # sum((1 - p) * t)
    fp = sp - tp                                     # sum(p * (1 - t))
    tversky = 1.0 - (tp + epsilon) / (tp + alpha * fn + (1.0 - alpha) * fp + epsilon)
    per_batch = jnp.mean(tversky, axis=1)            # (B,)

    if reduction == "mean":
        return jnp.mean(per_batch)
    # TODO(synk): the PyTorch module's second `if reduction == 'mean'` branch is dead
    # code; any non-'mean' reduction falls through to the per-batch vector, as here.
    return per_batch


def _reference(prediction, target, alpha=0.5, epsilon=1e-6):
    if target.ndim == 3:
        target = target[:, None, :, :]
    tp = (prediction * target).sum(axis=(-1, -2))
    fn = ((1 - prediction) * target).sum(axis=(-1, -2))
    fp = (prediction * (1 - target)).sum(axis=(-1, -2))
    tversky = jnp.mean(
        1 - (tp + epsilon) / (tp + alpha * fn + (1 - alpha) * fp + epsilon), axis=1)
    return tversky.mean()


if __name__ == "__main__":
    key = jax.random.PRNGKey(0)
    kp, kt = jax.random.split(key)
    B, C, H, W = 2, 4, 16, 16
    prediction = jax.nn.sigmoid(jax.random.normal(kp, (B, C, H, W), jnp.float32))
    target4 = (jax.random.uniform(kt, (B, C, H, W)) > 0.5).astype(jnp.float32)
    target3 = (jax.random.uniform(kt, (B, H, W)) > 0.5).astype(jnp.float32)

    # Full-channel target path.
    out4 = jax.block_until_ready(tversky_loss(prediction, target4))
    ref4 = _reference(prediction, target4)
    assert jnp.allclose(out4, ref4, atol=1e-5, rtol=1e-5), (out4, ref4)

    # Single-channel (broadcast) target path.
    out3 = jax.block_until_ready(tversky_loss(prediction, target3))
    ref3 = _reference(prediction, target3)
    assert jnp.allclose(out3, ref3, atol=1e-5, rtol=1e-5), (out3, ref3)

    print("KERNEL_OK")
</pallas_src>

<mosaic_0001>
module attributes {stable_mosaic.version = 11 : i64} {
  func.func @_tversky_partials_kernel(%arg0: i32, %arg1: i32, %arg2: memref<2x4x256xf32, #tpu.memory_space<vmem>>, %arg3: memref<2x4x256xf32, #tpu.memory_space<vmem>>, %arg4: memref<1x3x2x4xf32, #tpu.memory_space<vmem>>, %arg5: memref<2x4xf32, #tpu.memory_space<vmem>>, %arg6: memref<2x4xf32, #tpu.memory_space<vmem>>, %arg7: memref<2x4xf32, #tpu.memory_space<vmem>>) attributes {dimension_semantics = [#tpu.dimension_semantics<parallel>, #tpu.dimension_semantics<arbitrary>], iteration_bounds = array<i64: 1, 1>, scalar_prefetch = 0 : i64, scratch_operands = 3 : i64, tpu.core_type = #tpu.core_type<tc>, window_params = [{transform_indices = @transform_0, window_bounds = array<i64: 2, 4, 256>}, {transform_indices = @transform_1, window_bounds = array<i64: 2, 4, 256>}, {transform_indices = @transform_2, window_bounds = array<i64: 1, 3, 2, 4>}]} {
    %c0_i32 = arith.constant 0 : i32
    %0 = arith.cmpi eq, %arg1, %c0_i32 : i32
    %1 = arith.extui %0 : i1 to i32
    %c0_i32_0 = arith.constant 0 : i32
    %2 = arith.cmpi ne, %1, %c0_i32_0 : i32
    scf.if %2 {
      %cst_22 = arith.constant 0.000000e+00 : f32
      %21 = vector.broadcast %cst_22 : f32 to vector<2x4xf32>
      %c0_23 = arith.constant 0 : index
      %c0_24 = arith.constant 0 : index
      %22 = vector.load %arg5[%c0_23, %c0_24] : memref<2x4xf32, #tpu.memory_space<vmem>>, vector<2x4xf32>
      tpu.vector_store %arg5[%c0_23, %c0_24], %21 {strides = array<i32>} : memref<2x4xf32, #tpu.memory_space<vmem>>, vector<2x4xf32>,
      %cst_25 = arith.constant 0.000000e+00 : f32
      %23 = vector.broadcast %cst_25 : f32 to vector<2x4xf32>
      %c0_26 = arith.constant 0 : index
      %c0_27 = arith.constant 0 : index
      %24 = vector.load %arg6[%c0_26, %c0_27] : memref<2x4xf32, #tpu.memory_space<vmem>>, vector<2x4xf32>
      tpu.vector_store %arg6[%c0_26, %c0_27], %23 {strides = array<i32>} : memref<2x4xf32, #tpu.memory_space<vmem>>, vector<2x4xf32>,
      %cst_28 = arith.constant 0.000000e+00 : f32
      %25 = vector.broadcast %cst_28 : f32 to vector<2x4xf32>
      %c0_29 = arith.constant 0 : index
      %c0_30 = arith.constant 0 : index
      %26 = vector.load %arg7[%c0_29, %c0_30] : memref<2x4xf32, #tpu.memory_space<vmem>>, vector<2x4xf32>
      tpu.vector_store %arg7[%c0_29, %c0_30], %25 {strides = array<i32>} : memref<2x4xf32, #tpu.memory_space<vmem>>, vector<2x4xf32>,
    } else {
    }
    %c0 = arith.constant 0 : index
    %c0_1 = arith.constant 0 : index
    %c0_2 = arith.constant 0 : index
    %3 = vector.load %arg2[%c0, %c0_1, %c0_2] : memref<2x4x256xf32, #tpu.memory_space<vmem>>, vector<2x4x256xf32>
    %c0_3 = arith.constant 0 : index
    %c0_4 = arith.constant 0 : index
    %c0_5 = arith.constant 0 : index
    %4 = vector.load %arg3[%c0_3, %c0_4, %c0_5] : memref<2x4x256xf32, #tpu.memory_space<vmem>>, vector<2x4x256xf32>
    %c0_6 = arith.constant 0 : index
    %c0_7 = arith.constant 0 : index
    %5 = vector.load %arg5[%c0_6, %c0_7] : memref<2x4xf32, #tpu.memory_space<vmem>>, vector<2x4xf32>
    %6 = arith.mulf %3, %4 : vector<2x4x256xf32>
    %cst = arith.constant dense<0.000000e+00> : vector<2x4xf32>
    %7 = vector.multi_reduction <add>, %6, %cst [2] : vector<2x4x256xf32> to vector<2x4xf32>
    %8 = arith.addf %5, %7 : vector<2x4xf32>
    %c0_8 = arith.constant 0 : index
    %c0_9 = arith.constant 0 : index
    %9 = vector.load %arg5[%c0_8, %c0_9] : memref<2x4xf32, #tpu.memory_space<vmem>>, vector<2x4xf32>
    tpu.vector_store %arg5[%c0_8, %c0_9], %8 {strides = array<i32>} : memref<2x4xf32, #tpu.memory_space<vmem>>, vector<2x4xf32>,
    %c0_10 = arith.constant 0 : index
    %c0_11 = arith.constant 0 : index
    %10 = vector.load %arg6[%c0_10, %c0_11] : memref<2x4xf32, #tpu.memory_space<vmem>>, vector<2x4xf32>
    %cst_12 = arith.constant dense<0.000000e+00> : vector<2x4xf32>
    %11 = vector.multi_reduction <add>, %3, %cst_12 [2] : vector<2x4x256xf32> to vector<2x4xf32>
    %12 = arith.addf %10, %11 : vector<2x4xf32>
    %c0_13 = arith.constant 0 : index
    %c0_14 = arith.constant 0 : index
    %13 = vector.load %arg6[%c0_13, %c0_14] : memref<2x4xf32, #tpu.memory_space<vmem>>, vector<2x4xf32>
    tpu.vector_store %arg6[%c0_13, %c0_14], %12 {strides = array<i32>} : memref<2x4xf32, #tpu.memory_space<vmem>>, vector<2x4xf32>,
    %c0_15 = arith.constant 0 : index
    %c0_16 = arith.constant 0 : index
    %14 = vector.load %arg7[%c0_15, %c0_16] : memref<2x4xf32, #tpu.memory_space<vmem>>, vector<2x4xf32>
    %cst_17 = arith.constant dense<0.000000e+00> : vector<2x4xf32>
    %15 = vector.multi_reduction <add>, %4, %cst_17 [2] : vector<2x4x256xf32> to vector<2x4xf32>
    %16 = arith.addf %14, %15 : vector<2x4xf32>
    %c0_18 = arith.constant 0 : index
    %c0_19 = arith.constant 0 : index
    %17 = vector.load %arg7[%c0_18, %c0_19] : memref<2x4xf32, #tpu.memory_space<vmem>>, vector<2x4xf32>
    tpu.vector_store %arg7[%c0_18, %c0_19], %16 {strides = array<i32>} : memref<2x4xf32, #tpu.memory_space<vmem>>, vector<2x4xf32>,
    %c0_i32_20 = arith.constant 0 : i32
    %18 = arith.cmpi eq, %arg1, %c0_i32_20 : i32
    %19 = arith.extui %18 : i1 to i32
    %c0_i32_21 = arith.constant 0 : i32
    %20 = arith.cmpi ne, %19, %c0_i32_21 : i32
    scf.if %20 {
      %c0_22 = arith.constant 0 : index
      %c0_23 = arith.constant 0 : index
      %21 = vector.load %arg5[%c0_22, %c0_23] : memref<2x4xf32, #tpu.memory_space<vmem>>, vector<2x4xf32>
      %c0_24 = arith.constant 0 : index
      %c0_25 = arith.constant 0 : index
      %c0_26 = arith.constant 0 : index
      %c0_27 = arith.constant 0 : index
      %22 = vector.load %arg4[%c0_24, %c0_25, %c0_26, %c0_27] : memref<1x3x2x4xf32, #tpu.memory_space<vmem>>, vector<1x1x2x4xf32>
      %23 = vector.shape_cast %22 : vector<1x1x2x4xf32> to vector<2x4xf32>
      %24 = vector.shape_cast %21 : vector<2x4xf32> to vector<1x1x2x4xf32>
      tpu.vector_store %arg4[%c0_24, %c0_25, %c0_26, %c0_27], %24 {strides = array<i32>} : memref<1x3x2x4xf32, #tpu.memory_space<vmem>>, vector<1x1x2x4xf32>,
      %c0_28 = arith.constant 0 : index
      %c0_29 = arith.constant 0 : index
      %25 = vector.load %arg6[%c0_28, %c0_29] : memref<2x4xf32, #tpu.memory_space<vmem>>, vector<2x4xf32>
      %c0_30 = arith.constant 0 : index
      %c1 = arith.constant 1 : index
      %c0_31 = arith.constant 0 : index
      %c0_32 = arith.constant 0 : index
      %26 = vector.load %arg4[%c0_30, %c1, %c0_31, %c0_32] : memref<1x3x2x4xf32, #tpu.memory_space<vmem>>, vector<1x1x2x4xf32>
      %27 = vector.shape_cast %26 : vector<1x1x2x4xf32> to vector<2x4xf32>
      %28 = vector.shape_cast %25 : vector<2x4xf32> to vector<1x1x2x4xf32>
      tpu.vector_store %arg4[%c0_30, %c1, %c0_31, %c0_32], %28 {strides = array<i32>} : memref<1x3x2x4xf32, #tpu.memory_space<vmem>>, vector<1x1x2x4xf32>,
      %c0_33 = arith.constant 0 : index
      %c0_34 = arith.constant 0 : index
      %29 = vector.load %arg7[%c0_33, %c0_34] : memref<2x4xf32, #tpu.memory_space<vmem>>, vector<2x4xf32>
      %c0_35 = arith.constant 0 : index
      %c2 = arith.constant 2 : index
      %c0_36 = arith.constant 0 : index
      %c0_37 = arith.constant 0 : index
      %30 = vector.load %arg4[%c0_35, %c2, %c0_36, %c0_37] : memref<1x3x2x4xf32, #tpu.memory_space<vmem>>, vector<1x1x2x4xf32>
      %31 = vector.shape_cast %30 : vector<1x1x2x4xf32> to vector<2x4xf32>
      %32 = vector.shape_cast %29 : vector<2x4xf32> to vector<1x1x2x4xf32>
      tpu.vector_store %arg4[%c0_35, %c2, %c0_36, %c0_37], %32 {strides = array<i32>} : memref<1x3x2x4xf32, #tpu.memory_space<vmem>>, vector<1x1x2x4xf32>,
    } else {
    }
    return
  }
  func.func @transform_0(%arg0: i32, %arg1: i32) -> (i32, i32, i32) {
    %c1_i32 = arith.constant 1 : i32
    %0 = arith.muli %arg0, %c1_i32 : i32
    %1 = arith.addi %0, %arg1 : i32
    %c0_i32 = arith.constant 0 : i32
    %c0_i32_0 = arith.constant 0 : i32
    %c0_i32_1 = arith.constant 0 : i32
    return %c0_i32, %c0_i32_0, %1 : i32, i32, i32
  }
  func.func @transform_1(%arg0: i32, %arg1: i32) -> (i32, i32, i32) {
    %c1_i32 = arith.constant 1 : i32
    %0 = arith.muli %arg0, %c1_i32 : i32
    %1 = arith.addi %0, %arg1 : i32
    %c0_i32 = arith.constant 0 : i32
    %c0_i32_0 = arith.constant 0 : i32
    %c0_i32_1 = arith.constant 0 : i32
    return %c0_i32, %c0_i32_0, %1 : i32, i32, i32
  }
  func.func @transform_2(%arg0: i32, %arg1: i32) -> (i32, i32, i32, i32) {
    %c0_i32 = arith.constant 0 : i32
    %c0_i32_0 = arith.constant 0 : i32
    %c0_i32_1 = arith.constant 0 : i32
    %c0_i32_2 = arith.constant 0 : i32
    return %arg0, %c0_i32, %c0_i32_0, %c0_i32_1 : i32, i32, i32, i32
  }
}

</mosaic_0001>

<llo_original>
// kernel: tpu_custom_call.1
$region0: #{tpu_custom_call.1}
  #allocation0 [shape = 'u32[]', space=smem, size = 0x4, offset = 0x4, fixed_abs, tag = 'smem constant byte address 0x4 - core index']
  #allocation1 [shape = 'u32[72,128]{1,0:T(1,128)}', space=vmem, size = 0x9000, scoped, tag = 'internal scratch']
  #allocation2 [shape = 'f32[2,4]{1,0:T(2,128)}', space=vmem, size = 0x400, scoped, tag = 'scratch operand']
  #allocation3 [shape = 'f32[2,4]{1,0:T(2,128)}', space=vmem, size = 0x400, scoped, tag = 'scratch operand']
  #allocation4 [shape = 'f32[2,4]{1,0:T(2,128)}', space=vmem, size = 0x400, scoped, tag = 'scratch operand']
  %s0 = inlined_call_operand.hbm [shape: f32[2,4,256], index: 0, kind: input, shape index: {}]
  %s1 = inlined_call_operand.hbm [shape: f32[2,4,256], index: 1, kind: input, shape index: {}]
  %s2 = inlined_call_operand.hbm [shape: f32[1,3,2,4], index: 2, kind: output, shape index: {}]
  %s3 = sld [smem:[#allocation0]]
  $region34: #{tpu_custom_call.1} parent=0
    _
  %s5 = ssub.s32 1, %s3
  %s6 = scalar_select 0, %s5, %s3
  $region1: #{tpu_custom_call.1} parent=0
    #allocation5 [shape = 'u8[8192]{0}', space=vmem, size = 0x2000, scoped, tag = 'input window, operand 0, single buffered']
    #allocation6 [shape = 's32[1]{0}', space=sflag, size = 0x4, scoped, tag = 'scoped memory for tpu_custom_call.1']
    #allocation7 [shape = 's32[1]{0}', space=sflag, size = 0x4, scoped, tag = 'scoped memory for tpu_custom_call.1']
    #allocation8 [shape = 'u8[8192]{0}', space=vmem, size = 0x2000, scoped, tag = 'input window, operand 1, single buffered']
    #allocation9 [shape = 's32[1]{0}', space=sflag, size = 0x4, scoped, tag = 'scoped memory for tpu_custom_call.1']
    #allocation10 [shape = 'u8[3072]{0}', space=vmem, size = 0xc00, scoped, tag = 'output window, operand 0, single buffered']
    %7 = vsyncpa [#allocation6], 0
    %8 = vsyncpa [#allocation9], 0
    %9 = vsyncpa [#allocation7], 0
    // Predicated region
    $region2: #{tpu_custom_call.1} parent=1 // pred_check
      _
    $region3: #{tpu_custom_call.1} parent=1 // pred_check_branch
      %11 = sbr.rel (0) target = $region5
    $region4: #{tpu_custom_call.1} parent=1 // pred_region
      %s12 = sadd.s32 0, 0
      %s13 = smul.u32 2, %s12
      %15 = vsyncadd [#allocation6], 0
      %s16 = smul.addr %s13, 4
      %s17 = scalar_lea.hbm %s0, %s16
      %s18 = sshll.u32 %s17, 4
      %s19 = int_to_ptr.hbm [resolvable:$true] %s18
      %s20 = sshll.u32 [#allocation5], 4
      %s21 = int_to_ptr.vmem [resolvable:$true] %s20
      %26 = dma.hbm_to_vmem [thread:$0]  %s19, 256, %s21, [#allocation6], 128, 128, 8
    $region5: #{tpu_custom_call.1} parent=1 // pred_fallthru
      _
    // Predicated region
    $region6: #{tpu_custom_call.1} parent=1 // pred_check
      _
    $region7: #{tpu_custom_call.1} parent=1 // pred_check_branch
      %28 = sbr.rel (0) target = $region9
    $region8: #{tpu_custom_call.1} parent=1 // pred_region
      %s29 = sadd.s32 0, 0
      %s30 = smul.u32 2, %s29
      %32 = vsyncadd [#allocation9], 0
      %s33 = smul.addr %s30, 4
      %s34 = scalar_lea.hbm %s1, %s33
      %s35 = sshll.u32 %s34, 4
      %s36 = int_to_ptr.hbm [resolvable:$true] %s35
      %s37 = sshll.u32 [#allocation8], 4
      %s38 = int_to_ptr.vmem [resolvable:$true] %s37
      %43 = dma.hbm_to_vmem [thread:$0]  %s36, 256, %s38, [#allocation9], 128, 128, 8
    $region9: #{tpu_custom_call.1} parent=1 // pred_fallthru
      _
    // Predicated region
    $region10: #{tpu_custom_call.1} parent=1 // pred_check
      _
    $region11: #{tpu_custom_call.1} parent=1 // pred_check_branch
      %45 = sbr.rel (0) target = $region13
    $region12: #{tpu_custom_call.1} parent=1 // pred_region
      %47 = dma.done [#allocation6], 256
    $region13: #{tpu_custom_call.1} parent=1 // pred_fallthru
      _
    // Predicated region
    $region14: #{tpu_custom_call.1} parent=1 // pred_check
      _
    $region15: #{tpu_custom_call.1} parent=1 // pred_check_branch
      %49 = sbr.rel (0) target = $region17
    $region16: #{tpu_custom_call.1} parent=1 // pred_region
      %51 = dma.done [#allocation9], 256
    $region17: #{tpu_custom_call.1} parent=1 // pred_fallthru
      _
    %s52 = sadd.s32 0, 0
    %s53 = smul.u32 2, %s52
    %s54 = sadd.s32 0, 0
    %s55 = smul.u32 2, %s54
    %p56 = scmp.eq.s32.totalorder 0, 0
    // Predicated region
    $region18: #{tpu_custom_call.1} parent=1 // pred_check
      %p57 = pneg %p56
    $region19: #{tpu_custom_call.1} parent=1 // pred_check_branch
      %59 = sbr.rel (%p57) target = $region21
    $region20: #{tpu_custom_call.1} parent=1 // pred_region
      %vm60 = vcmask 25600
      %61 = vst.msk [vmem:[#allocation2] sm:$0x3] %vm60, 0.0
      %62 = vst.msk [vmem:[#allocation3] sm:$0x3] %vm60, 0.0
      %63 = vst.msk [vmem:[#allocation4] sm:$0x3] %vm60, 0.0
    $region21: #{tpu_custom_call.1} parent=1 // pred_fallthru
      _
    %v64 = vld [vmem:[#allocation5] sm:$0xff]
    %v65 = vld [vmem:[#allocation5 + $0x8] sm:$0xff]
    %v66 = vld [vmem:[#allocation8] sm:$0xff]
    %v67 = vld [vmem:[#allocation8 + $0x8] sm:$0xff]
    %v68 = vld [vmem:[#allocation2] sm:$0x3]
    %v69 = vmul.f32 %v64, %v66
    %v70 = vmul.f32 %v65, %v67
    %73 = vst [vmem:[#allocation1] ss:$2 sm:$0xff] %v69
    %v74 = vld.sshfl [vmem:[#allocation1] sm:$0xff pattern:$0x75316420]
    %v75 = vld.sshfl [vmem:[#allocation1 + $0x8] sm:$0xff pattern:$0x75316420]
    %s76 = scalar_lea.vmem [#allocation1], 16
    %77 = vst [vmem:[%s76] ss:$2 sm:$0xff] %v70
    %v78 = vld.sshfl [vmem:[#allocation1 + $0x10] sm:$0xff pattern:$0x75316420]
    %v79 = vld.sshfl [vmem:[#allocation1 + $0x18] sm:$0xff pattern:$0x75316420]
    %vm84 = vcmask 1043456
    %v85 = vsel %vm84, %v74, 0.0
    %v86 = vsel %vm84, %v75, 0.0
    %v87 = vadd.f32 %v85, %v86
    %88 = vadd.xlane.f32.xlu0 %v87
    %v89 = vpop.xlane.xlu0 %88
    %v90 = vsel %vm84, %v78, 0.0
    %v91 = vsel %vm84, %v79, 0.0
    %v92 = vadd.f32 %v90, %v91
    %93 = vadd.xlane.f32.xlu0 %v92
    %v94 = vpop.xlane.xlu0 %93
    %v97 = vlaneseq
    %v98 = vand.u32 %v97, 127
    %v99 = vperm.slane %v89, %v98
    %v100 = vperm.slane %v94, %v98
    %vm101 = vcmask 1041409
    %v102 = vsel %vm101, %v100, %v99
    %v104 = vadd.f32 %v68, %v102
    %vm105 = vcmask 25600
    %106 = vst.msk [vmem:[#allocation2] sm:$0x3] %vm105, %v104
    %v107 = vld [vmem:[#allocation3] sm:$0x3]
    %110 = vst [vmem:[#allocation1] ss:$2 sm:$0xff] %v64
    %v111 = vld.sshfl [vmem:[#allocation1] sm:$0xff pattern:$0x75316420]
    %v112 = vld.sshfl [vmem:[#allocation1 + $0x8] sm:$0xff pattern:$0x75316420]
    %s113 = scalar_lea.vmem [#allocation1], 16
    %114 = vst [vmem:[%s113] ss:$2 sm:$0xff] %v65
    %v115 = vld.sshfl [vmem:[#allocation1 + $0x10] sm:$0xff pattern:$0x75316420]
    %v116 = vld.sshfl [vmem:[#allocation1 + $0x18] sm:$0xff pattern:$0x75316420]
    %v121 = vsel %vm84, %v111, 0.0
    %v122 = vsel %vm84, %v112, 0.0
    %v123 = vadd.f32 %v121, %v122
    %124 = vadd.xlane.f32.xlu0 %v123
    %v125 = vpop.xlane.xlu0 %124
    %v126 = vsel %vm84, %v115, 0.0
    %v127 = vsel %vm84, %v116, 0.0
    %v128 = vadd.f32 %v126, %v127
    %129 = vadd.xlane.f32.xlu0 %v128
    %v130 = vpop.xlane.xlu0 %129
    %v133 = vperm.slane %v125, %v98
    %v134 = vperm.slane %v130, %v98
    %v135 = vsel %vm101, %v134, %v133
    %v137 = vadd.f32 %v107, %v135
    %138 = vst.msk [vmem:[#allocation3] sm:$0x3] %vm105, %v137
    %v139 = vld [vmem:[#allocation4] sm:$0x3]
    %142 = vst [vmem:[#allocation1] ss:$2 sm:$0xff] %v66
    %v143 = vld.sshfl [vmem:[#allocation1] sm:$0xff pattern:$0x75316420]
    %v144 = vld.sshfl [vmem:[#allocation1 + $0x8] sm:$0xff pattern:$0x75316420]
    %s145 = scalar_lea.vmem [#allocation1], 16
    %146 = vst [vmem:[%s145] ss:$2 sm:$0xff] %v67
    %v147 = vld.sshfl [vmem:[#allocation1 + $0x10] sm:$0xff pattern:$0x75316420]
    %v148 = vld.sshfl [vmem:[#allocation1 + $0x18] sm:$0xff pattern:$0x75316420]
    %v153 = vsel %vm84, %v143, 0.0
    %v154 = vsel %vm84, %v144, 0.0
    %v155 = vadd.f32 %v153, %v154
    %156 = vadd.xlane.f32.xlu0 %v155
    %v157 = vpop.xlane.xlu0 %156
    %v158 = vsel %vm84, %v147, 0.0
    %v159 = vsel %vm84, %v148, 0.0
    %v160 = vadd.f32 %v158, %v159
    %161 = vadd.xlane.f32.xlu0 %v160
    %v162 = vpop.xlane.xlu0 %161
    %v165 = vperm.slane %v157, %v98
    %v166 = vperm.slane %v162, %v98
    %v167 = vsel %vm101, %v166, %v165
    %v169 = vadd.f32 %v139, %v167
    %170 = vst.msk [vmem:[#allocation4] sm:$0x3] %vm105, %v169
    // Predicated region
    $region22: #{tpu_custom_call.1} parent=1 // pred_check
      %p171 = pneg %p56
    $region23: #{tpu_custom_call.1} parent=1 // pred_check_branch
      %173 = sbr.rel (%p171) target = $region25
    $region24: #{tpu_custom_call.1} parent=1 // pred_region
      %v174 = vld [vmem:[#allocation2] sm:$0x3]
      %175 = vst.msk [vmem:[#allocation10] sm:$0x3] %vm105, %v174
      %v176 = vld [vmem:[#allocation3] sm:$0x3]
      %s177 = scalar_lea.vmem [#allocation10], 2
      %178 = vst.msk [vmem:[%s177] sm:$0x3] %vm105, %v176
      %v179 = vld [vmem:[#allocation4] sm:$0x3]
      %s180 = scalar_lea.vmem [#allocation10], 4
      %181 = vst.msk [vmem:[%s180] sm:$0x3] %vm105, %v179
    $region25: #{tpu_custom_call.1} parent=1 // pred_fallthru
      _
    // Predicated region
    $region26: #{tpu_custom_call.1} parent=1 // pred_check
      _
    $region27: #{tpu_custom_call.1} parent=1 // pred_check_branch
      %183 = sbr.rel (0) target = $region29
    $region28: #{tpu_custom_call.1} parent=1 // pred_region
      %185 = vsyncadd [#allocation7], 0
      %s186 = sshll.u32 [#allocation10], 4
      %s187 = int_to_ptr.vmem [resolvable:$true] %s186
      %s188 = sshll.u32 %s2, 4
      %s189 = int_to_ptr.hbm [resolvable:$true] %s188
      %194 = dma.vmem_to_hbm [thread:$0]  %s187, 96, %s189, [#allocation7], 32, 32, 2
    $region29: #{tpu_custom_call.1} parent=1 // pred_fallthru
      _
    // Predicated region
    $region30: #{tpu_custom_call.1} parent=1 // pred_check
      _
    $region31: #{tpu_custom_call.1} parent=1 // pred_check_branch
      %196 = sbr.rel (0) target = $region33
    $region32: #{tpu_custom_call.1} parent=1 // pred_region
      %198 = dma.done [#allocation7], 96
    $region33: #{tpu_custom_call.1} parent=1 // pred_fallthru
      _
    %199 = vsyncpa [#allocation6], 1
    %200 = vsyncpa [#allocation9], 1
    %201 = vsyncpa [#allocation7], 1

</llo_original>
